<compile_context>
chip_gen: v6e
topology: v6e:2x2x1
jax: 0.10.0
libtpu: 0.0.40
codegen_flags: <defaults>
</compile_context>

<pallas_src>
import jax
import jax.numpy as jnp
from jax.experimental import pallas as pl
from jax.experimental.pallas import tpu as pltpu

IN_DIM = 3 * 21      # 63
H1 = 500
H2 = 128
OUT_DIM = 17

H1_PAD = 512         # 500 -> 512 (dense fc1 N / fc2 K)
OUT_PAD = 128        # 17 -> 128 (lane-dense stores)
TM_MAX = 1024        # batch-tile rows per grid step


def _mlp_kernel(x_ref, w1_ref, b1_ref, w2_ref, b2_ref, w3_ref, b3_ref, o_ref):
    # fc1 + ReLU   (K=63 is unaligned; Mosaic masks it internally)
    h1 = jnp.dot(x_ref[...], w1_ref[...], preferred_element_type=jnp.float32)
    h1 = jnp.maximum(h1 + b1_ref[...], 0.0)
    # fc2 + ReLU
    h2 = jnp.dot(h1, w2_ref[...], preferred_element_type=jnp.float32)
    h2 = jnp.maximum(h2 + b2_ref[...], 0.0)
    # fc3 (no activation)
    out = jnp.dot(h2, w3_ref[...], preferred_element_type=jnp.float32)
    o_ref[...] = (out + b3_ref[...]).astype(o_ref.dtype)


def _round_up(x, m):
    return -(-x // m) * m


def _pad_cols(a, cols):
    return jnp.pad(a, ((0, 0), (0, cols - a.shape[1])))


def _pad_params(params):
    """Zero-pad weight/bias lane dims (exact w.r.t. the math). W1's K stays 63."""
    w1, b1, w2, b2, w3, b3 = params
    return (
        _pad_cols(w1, H1_PAD),                       # (63, 512)
        _pad_cols(b1, H1_PAD),                       # (1, 512)
        jnp.pad(w2, ((0, H1_PAD - H1), (0, 0))),     # (512, 128), padded K rows = 0
        b2,                                          # (1, 128)
        _pad_cols(w3, OUT_PAD),                      # (128, 128)
        _pad_cols(b3, OUT_PAD),                      # (1, 128)
    )


def _choose_tile(n):
    """Pick (tm, n_pad): tm a multiple of 8, n_pad a multiple of tm, and >= 2
    grid steps (even count for large batches) so both v7x TensorCores get work."""
    n8 = max(8, _round_up(n, 8))
    if n8 <= 8:
        return n8, n8
    steps = max(2, -(-n8 // TM_MAX))
    if steps > 2 and steps % 2:
        steps += 1
    tm = min(TM_MAX, _round_up(-(-n8 // steps), 8))
    n_pad = _round_up(n8, tm)
    return tm, n_pad


def gesture_fc_type_vowel_forward(x, params, *, trim=True):
    """x: any shape whose total size is divisible by 63.
    Returns (N, 17) f32.  With trim=False the raw (n_pad, 128) padded slab is
    returned so a downstream consumer can fuse the trim and skip an HBM pass."""
    w1, b1, w2, b2, w3, b3 = _pad_params(params)

    x2d = x.reshape(-1, IN_DIM).astype(jnp.float32)
    n = x2d.shape[0]
    tm, n_pad = _choose_tile(n)
    if n_pad != n:
        x2d = jnp.pad(x2d, ((0, n_pad - n), (0, 0)))   # rows only; no column pad

    out = pl.pallas_call(
        _mlp_kernel,
        out_shape=jax.ShapeDtypeStruct((n_pad, OUT_PAD), jnp.float32),
        grid=(n_pad // tm,),
        in_specs=[
            pl.BlockSpec((tm, IN_DIM), lambda i: (i, 0)),       # x tile (pipelined)
            pl.BlockSpec((IN_DIM, H1_PAD), lambda i: (0, 0)),   # W1 (VMEM-resident)
            pl.BlockSpec((1, H1_PAD), lambda i: (0, 0)),        # b1
            pl.BlockSpec((H1_PAD, H2), lambda i: (0, 0)),       # W2
            pl.BlockSpec((1, H2), lambda i: (0, 0)),            # b2
            pl.BlockSpec((H2, OUT_PAD), lambda i: (0, 0)),      # W3
            pl.BlockSpec((1, OUT_PAD), lambda i: (0, 0)),       # b3
        ],
        out_specs=pl.BlockSpec((tm, OUT_PAD), lambda i: (i, 0)),
        compiler_params=pltpu.CompilerParams(
            dimension_semantics=("parallel",),
            vmem_limit_bytes=32 << 20,
        ),
    )(x2d, w1, b1, w2, b2, w3, b3)

    if not trim:
        return out
    return out[:n, :OUT_DIM]


def init_params(key):
    """Deterministic init mimicking torch.nn.Linear (uniform +/- 1/sqrt(fan_in)).
    Weights stored as (in, out); biases as (1, out)."""
    ks = jax.random.split(key, 6)

    def linear(kw, kb, fan_in, fan_out):
        bound = 1.0 / jnp.sqrt(jnp.float32(fan_in))
        w = jax.random.uniform(kw, (fan_in, fan_out), jnp.float32, -bound, bound)
        b = jax.random.uniform(kb, (1, fan_out), jnp.float32, -bound, bound)
        return w, b

    w1, b1 = linear(ks[0], ks[1], IN_DIM, H1)
    w2, b2 = linear(ks[2], ks[3], H1, H2)
    w3, b3 = linear(ks[4], ks[5], H2, OUT_DIM)
    return (w1, b1, w2, b2, w3, b3)


def reference_forward(x, params):
    w1, b1, w2, b2, w3, b3 = params
    x2d = x.reshape(-1, IN_DIM).astype(jnp.float32)
    h1 = jnp.maximum(x2d @ w1 + b1, 0.0)
    h2 = jnp.maximum(h1 @ w2 + b2, 0.0)
    return h2 @ w3 + b3


if __name__ == "__main__":
    key = jax.random.PRNGKey(0)
    k_params, k_x, k_x2, k_x3 = jax.random.split(key, 4)

    params = init_params(k_params)

    # Small input consistent with the module: 4 samples of 21 keypoints x 3 coords.
    x = jax.random.normal(k_x, (4, 21, 3), dtype=jnp.float32)
    out = jax.block_until_ready(gesture_fc_type_vowel_forward(x, params))
    ref = reference_forward(x, params)
    assert out.shape == (4, OUT_DIM), out.shape
    assert jnp.allclose(out, ref, atol=1e-4, rtol=1e-4), float(jnp.max(jnp.abs(out - ref)))

    # Mid-size batch: exercises the 2-step grid (v7x megacore split) + row padding.
    x_mid = jax.random.normal(k_x2, (300, 21, 3), dtype=jnp.float32)
    out_mid = jax.block_until_ready(gesture_fc_type_vowel_forward(x_mid, params))
    ref_mid = reference_forward(x_mid, params)
    assert out_mid.shape == (300, OUT_DIM), out_mid.shape
    assert jnp.allclose(out_mid, ref_mid, atol=1e-4, rtol=1e-4), float(
        jnp.max(jnp.abs(out_mid - ref_mid)))

    # Larger batch: exact multiple of the tile (no row padding), big-M tiles.
    x_big = jax.random.normal(k_x3, (1024, 21, 3), dtype=jnp.float32)
    out_big = jax.block_until_ready(gesture_fc_type_vowel_forward(x_big, params))
    ref_big = reference_forward(x_big, params)
    assert out_big.shape == (1024, OUT_DIM), out_big.shape
    assert jnp.allclose(out_big, ref_big, atol=1e-4, rtol=1e-4), float(
        jnp.max(jnp.abs(out_big - ref_big)))

    print("KERNEL_OK")
</pallas_src>

<mosaic_0001>
module attributes {stable_mosaic.version = 11 : i64} {
  func.func @_mlp_kernel(%arg0: i32, %arg1: memref<8x63xf32, #tpu.memory_space<vmem>>, %arg2: memref<63x512xf32, #tpu.memory_space<vmem>>, %arg3: memref<1x512xf32, #tpu.memory_space<vmem>>, %arg4: memref<512x128xf32, #tpu.memory_space<vmem>>, %arg5: memref<1x128xf32, #tpu.memory_space<vmem>>, %arg6: memref<128x128xf32, #tpu.memory_space<vmem>>, %arg7: memref<1x128xf32, #tpu.memory_space<vmem>>, %arg8: memref<8x128xf32, #tpu.memory_space<vmem>>) attributes {dimension_semantics = [#tpu.dimension_semantics<parallel>], iteration_bounds = array<i64: 1>, scalar_prefetch = 0 : i64, scratch_operands = 0 : i64, tpu.core_type = #tpu.core_type<tc>, window_params = [{transform_indices = @transform_0, window_bounds = array<i64: 8, 63>}, {pipeline_mode = #tpu.pipeline_mode<synchronous>, transform_indices = @transform_1, window_bounds = array<i64: 63, 512>}, {pipeline_mode = #tpu.pipeline_mode<synchronous>, transform_indices = @transform_2, window_bounds = array<i64: 1, 512>}, {pipeline_mode = #tpu.pipeline_mode<synchronous>, transform_indices = @transform_3, window_bounds = array<i64: 512, 128>}, {pipeline_mode = #tpu.pipeline_mode<synchronous>, transform_indices = @transform_4, window_bounds = array<i64: 1, 128>}, {pipeline_mode = #tpu.pipeline_mode<synchronous>, transform_indices = @transform_5, window_bounds = array<i64: 128, 128>}, {pipeline_mode = #tpu.pipeline_mode<synchronous>, transform_indices = @transform_6, window_bounds = array<i64: 1, 128>}, {transform_indices = @transform_7, window_bounds = array<i64: 8, 128>}]} {
    %c0 = arith.constant 0 : index
    %c0_0 = arith.constant 0 : index
    %0 = vector.load %arg1[%c0, %c0_0] : memref<8x63xf32, #tpu.memory_space<vmem>>, vector<8x63xf32>
    %c0_1 = arith.constant 0 : index
    %c0_2 = arith.constant 0 : index
    %1 = vector.load %arg2[%c0_1, %c0_2] : memref<63x512xf32, #tpu.memory_space<vmem>>, vector<63x512xf32>
    %cst = arith.constant dense<0.000000e+00> : vector<8x512xf32>
    %2 = tpu.matmul %0, %1, %cst {dimension_numbers = #tpu.dot_dimension_numbers<[1], [0], [0], [1], [0, 0, 1, 1], [], []>} : vector<8x63xf32>, vector<63x512xf32>, vector<8x512xf32> -> vector<8x512xf32>
    %c0_3 = arith.constant 0 : index
    %c0_4 = arith.constant 0 : index
    %3 = vector.load %arg3[%c0_3, %c0_4] : memref<1x512xf32, #tpu.memory_space<vmem>>, vector<1x512xf32>
    %4 = vector.broadcast %3 : vector<1x512xf32> to vector<8x512xf32>
    %5 = arith.addf %2, %4 : vector<8x512xf32>
    %cst_5 = arith.constant 0.000000e+00 : f32
    %6 = vector.broadcast %cst_5 : f32 to vector<8x512xf32>
    %7 = arith.maximumf %5, %6 : vector<8x512xf32>
    %c0_6 = arith.constant 0 : index
    %c0_7 = arith.constant 0 : index
    %8 = vector.load %arg4[%c0_6, %c0_7] : memref<512x128xf32, #tpu.memory_space<vmem>>, vector<512x128xf32>
    %cst_8 = arith.constant dense<0.000000e+00> : vector<8x128xf32>
    %9 = tpu.matmul %7, %8, %cst_8 {dimension_numbers = #tpu.dot_dimension_numbers<[1], [0], [0], [1], [0, 0, 1, 1], [], []>} : vector<8x512xf32>, vector<512x128xf32>, vector<8x128xf32> -> vector<8x128xf32>
    %c0_9 = arith.constant 0 : index
    %c0_10 = arith.constant 0 : index
    %10 = vector.load %arg5[%c0_9, %c0_10] : memref<1x128xf32, #tpu.memory_space<vmem>>, vector<1x128xf32>
    %11 = vector.broadcast %10 : vector<1x128xf32> to vector<8x128xf32>
    %12 = arith.addf %9, %11 : vector<8x128xf32>
    %cst_11 = arith.constant 0.000000e+00 : f32
    %13 = vector.broadcast %cst_11 : f32 to vector<8x128xf32>
    %14 = arith.maximumf %12, %13 : vector<8x128xf32>
    %c0_12 = arith.constant 0 : index
    %c0_13 = arith.constant 0 : index
    %15 = vector.load %arg6[%c0_12, %c0_13] : memref<128x128xf32, #tpu.memory_space<vmem>>, vector<128x128xf32>
    %cst_14 = arith.constant dense<0.000000e+00> : vector<8x128xf32>
    %16 = tpu.matmul %14, %15, %cst_14 {dimension_numbers = #tpu.dot_dimension_numbers<[1], [0], [0], [1], [0, 0, 1, 1], [], []>} : vector<8x128xf32>, vector<128x128xf32>, vector<8x128xf32> -> vector<8x128xf32>
    %c0_15 = arith.constant 0 : index
    %c0_16 = arith.constant 0 : index
    %17 = vector.load %arg7[%c0_15, %c0_16] : memref<1x128xf32, #tpu.memory_space<vmem>>, vector<1x128xf32>
    %18 = vector.broadcast %17 : vector<1x128xf32> to vector<8x128xf32>
    %19 = arith.addf %16, %18 : vector<8x128xf32>
    %c0_17 = arith.constant 0 : index
    %c0_18 = arith.constant 0 : index
    %20 = vector.load %arg8[%c0_17, %c0_18] : memref<8x128xf32, #tpu.memory_space<vmem>>, vector<8x128xf32>
    tpu.vector_store %arg8[%c0_17, %c0_18], %19 {strides = array<i32>} : memref<8x128xf32, #tpu.memory_space<vmem>>, vector<8x128xf32>,
    return
  }
  func.func @transform_0(%arg0: i32) -> (i32, i32) {
    %c0_i32 = arith.constant 0 : i32
    %c0_i32_0 = arith.constant 0 : i32
    return %arg0, %c0_i32 : i32, i32
  }
  func.func @transform_1(%arg0: i32) -> (i32, i32) {
    %c0_i32 = arith.constant 0 : i32
    %c0_i32_0 = arith.constant 0 : i32
    %c0_i32_1 = arith.constant 0 : i32
    return %c0_i32, %c0_i32_0 : i32, i32
  }
  func.func @transform_2(%arg0: i32) -> (i32, i32) {
    %c0_i32 = arith.constant 0 : i32
    %c0_i32_0 = arith.constant 0 : i32
    %c0_i32_1 = arith.constant 0 : i32
    return %c0_i32, %c0_i32_0 : i32, i32
  }
  func.func @transform_3(%arg0: i32) -> (i32, i32) {
    %c0_i32 = arith.constant 0 : i32
    %c0_i32_0 = arith.constant 0 : i32
    %c0_i32_1 = arith.constant 0 : i32
    return %c0_i32, %c0_i32_0 : i32, i32
  }
  func.func @transform_4(%arg0: i32) -> (i32, i32) {
    %c0_i32 = arith.constant 0 : i32
    %c0_i32_0 = arith.constant 0 : i32
    %c0_i32_1 = arith.constant 0 : i32
    return %c0_i32, %c0_i32_0 : i32, i32
  }
  func.func @transform_5(%arg0: i32) -> (i32, i32) {
    %c0_i32 = arith.constant 0 : i32
    %c0_i32_0 = arith.constant 0 : i32
    %c0_i32_1 = arith.constant 0 : i32
    return %c0_i32, %c0_i32_0 : i32, i32
  }
  func.func @transform_6(%arg0: i32) -> (i32, i32) {
    %c0_i32 = arith.constant 0 : i32
    %c0_i32_0 = arith.constant 0 : i32
    %c0_i32_1 = arith.constant 0 : i32
    return %c0_i32, %c0_i32_0 : i32, i32
  }
  func.func @transform_7(%arg0: i32) -> (i32, i32) {
    %c0_i32 = arith.constant 0 : i32
    %c0_i32_0 = arith.constant 0 : i32
    return %arg0, %c0_i32 : i32, i32
  }
}

</mosaic_0001>

<llo_original>
// kernel: tpu_custom_call.1
$region0: #{tpu_custom_call.1}
  #allocation0 [shape = 'u32[]', space=smem, size = 0x4, offset = 0x4, fixed_abs, tag = 'smem constant byte address 0x4 - core index']
  #allocation1 [shape = 'u32[144,128]{1,0:T(1,128)}', space=vmem, size = 0x12000, scoped, tag = 'internal scratch']
  %s0 = inlined_call_operand.hbm [shape: f32[8,63], index: 0, kind: input, shape index: {}]
  %s1 = inlined_call_operand.hbm [shape: f32[63,512], index: 1, kind: input, shape index: {}]
  %s2 = inlined_call_operand.hbm [shape: f32[1,512], index: 2, kind: input, shape index: {}]
  %s3 = inlined_call_operand.hbm [shape: f32[512,128], index: 3, kind: input, shape index: {}]
  %s4 = inlined_call_operand.vmem [shape: f32[1,128], index: 4, kind: input, shape index: {}]
  %s5 = inlined_call_operand.hbm [shape: f32[128,128], index: 5, kind: input, shape index: {}]
  %s6 = inlined_call_operand.vmem [shape: f32[1,128], index: 6, kind: input, shape index: {}]
  %s7 = inlined_call_operand.hbm [shape: f32[8,128], index: 7, kind: output, shape index: {}]
  %s8 = sld [smem:[#allocation0]]
  $region58: #{tpu_custom_call.1} parent=0
    _
  %s10 = ssub.s32 1, %s8
  %s11 = scalar_select 0, %s10, %s8
  $region1: #{tpu_custom_call.1} parent=0
    #allocation2 [shape = 'u8[4096]{0}', space=vmem, size = 0x1000, scoped, tag = 'input window, operand 0, single buffered']
    #allocation3 [shape = 's32[1]{0}', space=sflag, size = 0x4, scoped, tag = 'scoped memory for tpu_custom_call.1']
    #allocation4 [shape = 's32[1]{0}', space=sflag, size = 0x4, scoped, tag = 'scoped memory for tpu_custom_call.1']
    #allocation5 [shape = 'u8[131072]{0}', space=vmem, size = 0x20000, scoped, tag = 'input window, operand 1, single buffered']
    #allocation6 [shape = 's32[1]{0}', space=sflag, size = 0x4, scoped, tag = 'scoped memory for tpu_custom_call.1']
    #allocation7 [shape = 'u8[2048]{0}', space=vmem, size = 0x800, scoped, tag = 'input window, operand 2, single buffered']
    #allocation8 [shape = 'u8[262144]{0}', space=vmem, size = 0x40000, scoped, tag = 'input window, operand 3, single buffered']
    #allocation9 [shape = 's32[1]{0}', space=sflag, size = 0x4, scoped, tag = 'scoped memory for tpu_custom_call.1']
    #allocation10 [shape = 'u8[65536]{0}', space=vmem, size = 0x10000, scoped, tag = 'input window, operand 5, single buffered']
    #allocation11 [shape = 'u8[4096]{0}', space=vmem, size = 0x1000, scoped, tag = 'output window, operand 0, single buffered']
    %12 = vsyncpa [#allocation3], 0
    %13 = vsyncpa [#allocation6], 0
    %14 = vsyncpa [#allocation9], 0
    %15 = vsyncpa [#allocation4], 0
    // Predicated region
    $region2: #{tpu_custom_call.1} parent=1 // pred_check
      _
    $region3: #{tpu_custom_call.1} parent=1 // pred_check_branch
      %17 = sbr.rel (0) target = $region5
    $region4: #{tpu_custom_call.1} parent=1 // pred_region
      %s19 = ssub.s32 128, 128
      %20 = vsyncadd [#allocation3], %s19
      %s22 = sshll.u32 [#allocation2], 4
      %s23 = int_to_ptr.vmem [resolvable:$true] %s22
      %25 = dma.hbm_to_vmem [thread:$0]  %s0, 128, %s23, [#allocation3]
    $region5: #{tpu_custom_call.1} parent=1 // pred_fallthru
      _
    // Predicated region
    $region6: #{tpu_custom_call.1} parent=1 // pred_check
      _
    $region7: #{tpu_custom_call.1} parent=1 // pred_check_branch
      %27 = sbr.rel (0) target = $region9
    $region8: #{tpu_custom_call.1} parent=1 // pred_region
      %s29 = ssub.s32 4096, 4096
      %30 = vsyncadd [#allocation6], %s29
      %s31 = sshll.u32 [#allocation5], 4
      %s32 = int_to_ptr.vmem [resolvable:$true] %s31
      %37 = dma.hbm_to_vmem [thread:$0]  %s1, 4096, %s32, [#allocation6], 512, 512, 32
    $region9: #{tpu_custom_call.1} parent=1 // pred_fallthru
      _
    // Predicated region
    $region10: #{tpu_custom_call.1} parent=1 // pred_check
      _
    $region11: #{tpu_custom_call.1} parent=1 // pred_check_branch
      %39 = sbr.rel (0) target = $region13
    $region12: #{tpu_custom_call.1} parent=1 // pred_region
      %s41 = ssub.s32 64, 64
      %42 = vsyncadd [#allocation6], %s41
      %s44 = sshll.u32 [#allocation7], 4
      %s45 = int_to_ptr.vmem [resolvable:$true] %s44
      %47 = dma.hbm_to_vmem [thread:$0]  %s2, 64, %s45, [#allocation6]
    $region13: #{tpu_custom_call.1} parent=1 // pred_fallthru
      _
    // Predicated region
    $region14: #{tpu_custom_call.1} parent=1 // pred_check
      _
    $region15: #{tpu_custom_call.1} parent=1 // pred_check_branch
      %49 = sbr.rel (0) target = $region17
    $region16: #{tpu_custom_call.1} parent=1 // pred_region
      %s51 = ssub.s32 8192, 8192
      %52 = vsyncadd [#allocation9], %s51
      %s53 = sshll.u32 [#allocation8], 4
      %s54 = int_to_ptr.vmem [resolvable:$true] %s53
      %59 = dma.hbm_to_vmem [thread:$0]  %s3, 8192, %s54, [#allocation9], 128, 128, 8
    $region17: #{tpu_custom_call.1} parent=1 // pred_fallthru
      _
    // Predicated region
    $region18: #{tpu_custom_call.1} parent=1 // pred_check
      _
    $region19: #{tpu_custom_call.1} parent=1 // pred_check_branch
      %61 = sbr.rel (0) target = $region21
    $region20: #{tpu_custom_call.1} parent=1 // pred_region
      _
    $region21: #{tpu_custom_call.1} parent=1 // pred_fallthru
      _
    // Predicated region
    $region22: #{tpu_custom_call.1} parent=1 // pred_check
      _
    $region23: #{tpu_custom_call.1} parent=1 // pred_check_branch
      %63 = sbr.rel (0) target = $region25
    $region24: #{tpu_custom_call.1} parent=1 // pred_region
      %s65 = ssub.s32 2048, 2048
      %66 = vsyncadd [#allocation9], %s65
      %s67 = sshll.u32 [#allocation10], 4
      %s68 = int_to_ptr.vmem [resolvable:$true] %s67
      %73 = dma.hbm_to_vmem [thread:$0]  %s5, 2048, %s68, [#allocation9], 128, 128, 8
    $region25: #{tpu_custom_call.1} parent=1 // pred_fallthru
      _
    // Predicated region
    $region26: #{tpu_custom_call.1} parent=1 // pred_check
      _
    $region27: #{tpu_custom_call.1} parent=1 // pred_check_branch
      %75 = sbr.rel (0) target = $region29
    $region28: #{tpu_custom_call.1} parent=1 // pred_region
      _
    $region29: #{tpu_custom_call.1} parent=1 // pred_fallthru
      _
    // Predicated region
    $region30: #{tpu_custom_call.1} parent=1 // pred_check
      _
    $region31: #{tpu_custom_call.1} parent=1 // pred_check_branch
      %77 = sbr.rel (0) target = $region33
    $region32: #{tpu_custom_call.1} parent=1 // pred_region
      %78 = dma.done [#allocation3], 128
    $region33: #{tpu_custom_call.1} parent=1 // pred_fallthru
      _
    // Predicated region
    $region34: #{tpu_custom_call.1} parent=1 // pred_check
      _
    $region35: #{tpu_custom_call.1} parent=1 // pred_check_branch
      %80 = sbr.rel (0) target = $region37
    $region36: #{tpu_custom_call.1} parent=1 // pred_region
      %81 = dma.done [#allocation6], 4096
    $region37: #{tpu_custom_call.1} parent=1 // pred_fallthru
      _
    // Predicated region
    $region38: #{tpu_custom_call.1} parent=1 // pred_check
      _
    $region39: #{tpu_custom_call.1} parent=1 // pred_check_branch
      %83 = sbr.rel (0) target = $region41
    $region40: #{tpu_custom_call.1} parent=1 // pred_region
      %84 = dma.done [#allocation6], 64
    $region41: #{tpu_custom_call.1} parent=1 // pred_fallthru
      _
    // Predicated region
    $region42: #{tpu_custom_call.1} parent=1 // pred_check
      _
    $region43: #{tpu_custom_call.1} parent=1 // pred_check_branch
      %86 = sbr.rel (0) target = $region45
    $region44: #{tpu_custom_call.1} parent=1 // pred_region
      %87 = dma.done [#allocation9], 8192
    $region45: #{tpu_custom_call.1} parent=1 // pred_fallthru
      _
    // Predicated region
    $region46: #{tpu_custom_call.1} parent=1 // pred_check
      _
    $region47: #{tpu_custom_call.1} parent=1 // pred_check_branch
      %89 = sbr.rel (0) target = $region49
    $region48: #{tpu_custom_call.1} parent=1 // pred_region
      %90 = dma.done [#allocation9], 2048
    $region49: #{tpu_custom_call.1} parent=1 // pred_fallthru
      _
    %v91 = vld [vmem:[#allocation2] sm:$0xff]
    %v92 = vld [vmem:[#allocation5] sm:$0xff]
    %v93 = vld [vmem:[#allocation5 + $0x8] sm:$0xff]
    %v94 = vld [vmem:[#allocation5 + $0x10] sm:$0xff]
    %v95 = vld [vmem:[#allocation5 + $0x18] sm:$0xff]
    %v96 = vld [vmem:[#allocation5 + $0x20] sm:$0xff]
    %v97 = vld [vmem:[#allocation5 + $0x28] sm:$0xff]
    %v98 = vld [vmem:[#allocation5 + $0x30] sm:$0xff]
    %v99 = vld [vmem:[#allocation5 + $0x38] sm:$0xff]
    %v100 = vld [vmem:[#allocation5 + $0x40] sm:$0xff]
    %v101 = vld [vmem:[#allocation5 + $0x48] sm:$0xff]
    %v102 = vld [vmem:[#allocation5 + $0x50] sm:$0xff]
    %v103 = vld [vmem:[#allocation5 + $0x58] sm:$0xff]
    %v104 = vld [vmem:[#allocation5 + $0x60] sm:$0xff]
    %v105 = vld [vmem:[#allocation5 + $0x68] sm:$0xff]
    %v106 = vld [vmem:[#allocation5 + $0x70] sm:$0xff]
    %v107 = vld [vmem:[#allocation5 + $0x78] sm:$0xff]
    %v108 = vld [vmem:[#allocation5 + $0x80] sm:$0xff]
    %v109 = vld [vmem:[#allocation5 + $0x88] sm:$0xff]
    %v110 = vld [vmem:[#allocation5 + $0x90] sm:$0xff]
    %v111 = vld [vmem:[#allocation5 + $0x98] sm:$0xff]
    %v112 = vld [vmem:[#allocation5 + $0xa0] sm:$0xff]
    %v113 = vld [vmem:[#allocation5 + $0xa8] sm:$0xff]
    %v114 = vld [vmem:[#allocation5 + $0xb0] sm:$0xff]
    %v115 = vld [vmem:[#allocation5 + $0xb8] sm:$0xff]
    %v116 = vld [vmem:[#allocation5 + $0xc0] sm:$0xff]
    %v117 = vld [vmem:[#allocation5 + $0xc8] sm:$0xff]
    %v118 = vld [vmem:[#allocation5 + $0xd0] sm:$0xff]
    %v119 = vld [vmem:[#allocation5 + $0xd8] sm:$0xff]
    %v120 = vld [vmem:[#allocation5 + $0xe0] sm:$0x7f]
    %v121 = vld [vmem:[#allocation5 + $0xe8] sm:$0x7f]
    %v122 = vld [vmem:[#allocation5 + $0xf0] sm:$0x7f]
    %v123 = vld [vmem:[#allocation5 + $0xf8] sm:$0x7f]
    %v124 = vld [vmem:[#allocation7] sm:$0xf]
    %v126 = vlaneseq
    %v127 = vshrl.u32 %v126, 7
    %v128 = vsub.s32 0, %v127
    %v129 = vrot.slane %v124, %v128
    %v130 = vlaneseq
    %v131 = vshrl.u32 %v130, 7
    %v132 = vsub.s32 1, %v131
    %v133 = vrot.slane %v124, %v132
    %v134 = vlaneseq
    %v135 = vshrl.u32 %v134, 7
    %v136 = vsub.s32 2, %v135
    %v137 = vrot.slane %v124, %v136
    %v138 = vlaneseq
    %v139 = vshrl.u32 %v138, 7
    %v140 = vsub.s32 3, %v139
    %v141 = vrot.slane %v124, %v140
    %vm146 = vcmask 515072
    %v148 = vsel %vm146, %v91, 0
    %vm150 = vcmask 1046528
    %v152 = vsel %vm150, %v120, 0
    %v155 = vsel %vm150, %v121, 0
    %v158 = vsel %vm150, %v122, 0
    %v161 = vsel %vm150, %v123, 0
    %163 = vmatprep.subr.mxu0 0.0
    %164 = vmatpush1.msra.mxu0 0.0
    %165 = vmatprep.subr.mxu0 0.0
    %166 = vmatpush1.msra.mxu0 0.0
    %167 = vmatprep.subr.mxu0 0.0
    %168 = vmatpush1.msra.mxu0 0.0
    %169 = vmatprep.subr.mxu0 0.0
    %170 = vmatpush1.msra.mxu0 0.0
    %171 = vmatprep.subr.mxu0 0.0
    %172 = vmatpush1.msra.mxu0 0.0
    %173 = vmatprep.subr.mxu0 0.0
    %174 = vmatpush1.msra.mxu0 0.0
    %175 = vmatprep.subr.mxu0 0.0
    %176 = vmatpush1.msra.mxu0 0.0
    %177 = vmatprep.subr.mxu0 0.0
    %178 = vmatpush1.msra.mxu0 0.0
    %179 = vmatprep.subr.mxu0 %v155
    %180 = vmatpush1.msra.mxu0 %v152
    %181 = vmatprep.subr.mxu0 %v117
    %182 = vmatpush1.msra.mxu0 %v116
    %183 = vmatprep.subr.mxu0 %v113
    %184 = vmatpush1.msra.mxu0 %v112
    %185 = vmatprep.subr.mxu0 %v109
    %186 = vmatpush1.msra.mxu0 %v108
    %187 = vmatprep.subr.mxu0 %v105
    %188 = vmatpush1.msra.mxu0 %v104
    %189 = vmatprep.subr.mxu0 %v101
    %190 = vmatpush1.msra.mxu0 %v100
    %191 = vmatprep.subr.mxu0 %v97
    %192 = vmatpush1.msra.mxu0 %v96
    %193 = vmatprep.subr.mxu0 %v93
    %194 = vmatpush1.msra.mxu0 %v92
    %195 = vmatprep.subr.mxu0 0.0
    %196 = vmatpush2.msra.mxu0 0.0
    %197 = vmatprep.subr.mxu0 0.0
    %198 = vmatpush2.msra.mxu0 0.0
    %199 = vmatprep.subr.mxu0 0.0
    %200 = vmatpush2.msra.mxu0 0.0
    %201 = vmatprep.subr.mxu0 0.0
    %202 = vmatpush2.msra.mxu0 0.0
    %203 = vmatprep.subr.mxu0 0.0
    %204 = vmatpush2.msra.mxu0 0.0
    %205 = vmatprep.subr.mxu0 0.0
    %206 = vmatpush2.msra.mxu0 0.0
    %207 = vmatprep.subr.mxu0 0.0
    %208 = vmatpush2.msra.mxu0 0.0
    %209 = vmatprep.subr.mxu0 0.0
    %210 = vmatpush2.msra.mxu0 0.0
    %211 = vmatprep.subr.mxu0 0.0
    %212 = vmatpush2.msra.mxu0 0.0
    %213 = vmatprep.subr.mxu0 0.0
    %214 = vmatpush2.msra.mxu0 0.0
    %215 = vmatprep.subr.mxu0 0.0
    %216 = vmatpush2.msra.mxu0 0.0
    %217 = vmatprep.subr.mxu0 0.0
    %218 = vmatpush2.msra.mxu0 0.0
    %219 = vmatprep.subr.mxu0 0.0
    %220 = vmatpush2.msra.mxu0 0.0
    %221 = vmatprep.subr.mxu0 0.0
    %222 = vmatpush2.msra.mxu0 0.0
    %223 = vmatprep.subr.mxu0 0.0
    %224 = vmatpush2.msra.mxu0 0.0
    %225 = vmatprep.subr.mxu0 0.0
    %226 = vmatpush2.msra.mxu0 0.0
    %227 = vmatprep.mubr.f32.mxu0 0.0
    %228 = vmatmul.mubr.f32.gmra.mxu0 %v148
    %v229 = vpop.f32.mrf.mxu0
    %v230 = vadd.f32 %v129, %v229
    %v231 = vpop.f32.mrf.mxu0
    %v232 = vadd.f32 %v133, %v231
    %233 = vdwg.mxu0
    %234 = vmatprep.subr.mxu0 0.0
    %235 = vmatpush1.msra.mxu0 0.0
    %236 = vmatprep.subr.mxu0 0.0
    %237 = vmatpush1.msra.mxu0 0.0
    %238 = vmatprep.subr.mxu0 0.0
    %239 = vmatpush1.msra.mxu0 0.0
    %240 = vmatprep.subr.mxu0 0.0
    %241 = vmatpush1.msra.mxu0 0.0
    %242 = vmatprep.subr.mxu0 0.0
    %243 = vmatpush1.msra.mxu0 0.0
    %244 = vmatprep.subr.mxu0 0.0
    %245 = vmatpush1.msra.mxu0 0.0
    %246 = vmatprep.subr.mxu0 0.0
    %247 = vmatpush1.msra.mxu0 0.0
    %248 = vmatprep.subr.mxu0 0.0
    %249 = vmatpush1.msra.mxu0 0.0
    %250 = vmatprep.subr.mxu0 %v161
    %251 = vmatpush1.msra.mxu0 %v158
    %252 = vmatprep.subr.mxu0 %v119
    %253 = vmatpush1.msra.mxu0 %v118
    %254 = vmatprep.subr.mxu0 %v115
    %255 = vmatpush1.msra.mxu0 %v114
    %256 = vmatprep.subr.mxu0 %v111
    %257 = vmatpush1.msra.mxu0 %v110
    %258 = vmatprep.subr.mxu0 %v107
    %259 = vmatpush1.msra.mxu0 %v106
    %260 = vmatprep.subr.mxu0 %v103
    %261 = vmatpush1.msra.mxu0 %v102
    %262 = vmatprep.subr.mxu0 %v99
    %263 = vmatpush1.msra.mxu0 %v98
    %264 = vmatprep.subr.mxu0 %v95
    %265 = vmatpush1.msra.mxu0 %v94
    %266 = vmatprep.subr.mxu0 0.0
    %267 = vmatpush2.msra.mxu0 0.0
    %268 = vmatprep.subr.mxu0 0.0
    %269 = vmatpush2.msra.mxu0 0.0
    %270 = vmatprep.subr.mxu0 0.0
    %271 = vmatpush2.msra.mxu0 0.0
    %272 = vmatprep.subr.mxu0 0.0
    %273 = vmatpush2.msra.mxu0 0.0
    %274 = vmatprep.subr.mxu0 0.0
    %275 = vmatpush2.msra.mxu0 0.0
    %276 = vmatprep.subr.mxu0 0.0
    %277 = vmatpush2.msra.mxu0 0.0
    %278 = vmatprep.subr.mxu0 0.0
    %279 = vmatpush2.msra.mxu0 0.0
    %280 = vmatprep.subr.mxu0 0.0
    %281 = vmatpush2.msra.mxu0 0.0
    %282 = vmatprep.subr.mxu0 0.0
    %283 = vmatpush2.msra.mxu0 0.0
    %284 = vmatprep.subr.mxu0 0.0
    %285 = vmatpush2.msra.mxu0 0.0
    %286 = vmatprep.subr.mxu0 0.0
    %287 = vmatpush2.msra.mxu0 0.0
    %288 = vmatprep.subr.mxu0 0.0
    %289 = vmatpush2.msra.mxu0 0.0
    %290 = vmatprep.subr.mxu0 0.0
    %291 = vmatpush2.msra.mxu0 0.0
    %292 = vmatprep.subr.mxu0 0.0
    %293 = vmatpush2.msra.mxu0 0.0
    %294 = vmatprep.subr.mxu0 0.0
    %295 = vmatpush2.msra.mxu0 0.0
    %296 = vmatprep.subr.mxu0 0.0
    %297 = vmatpush2.msra.mxu0 0.0
    %298 = vmatprep.mubr.f32.mxu0 0.0
    %299 = vmatmul.mubr.f32.gmra.mxu0 %v148
    %v300 = vpop.f32.mrf.mxu0
    %v301 = vadd.f32 %v137, %v300
    %v302 = vpop.f32.mrf.mxu0
    %v303 = vadd.f32 %v141, %v302
    %304 = vdwg.mxu0
    %v305 = vmax.f32 %v230, 0.0
    %v306 = vmax.f32 %v232, 0.0
    %v307 = vmax.f32 %v301, 0.0
    %v308 = vmax.f32 %v303, 0.0
    %v309 = vld [vmem:[#allocation8] sm:$0xff]
    %v310 = vld [vmem:[#allocation8 + $0x8] sm:$0xff]
    %v311 = vld [vmem:[#allocation8 + $0x10] sm:$0xff]
    %v312 = vld [vmem:[#allocation8 + $0x18] sm:$0xff]
    %v313 = vld [vmem:[#allocation8 + $0x20] sm:$0xff]
    %v314 = vld [vmem:[#allocation8 + $0x28] sm:$0xff]
    %v315 = vld [vmem:[#allocation8 + $0x30] sm:$0xff]
    %v316 = vld [vmem:[#allocation8 + $0x38] sm:$0xff]
    %v317 = vld [vmem:[#allocation8 + $0x40] sm:$0xff]
    %v318 = vld [vmem:[#allocation8 + $0x48] sm:$0xff]
    %v319 = vld [vmem:[#allocation8 + $0x50] sm:$0xff]
    %v320 = vld [vmem:[#allocation8 + $0x58] sm:$0xff]
    %v321 = vld [vmem:[#allocation8 + $0x60] sm:$0xff]
    %v322 = vld [vmem:[#allocation8 + $0x68] sm:$0xff]
    %v323 = vld [vmem:[#allocation8 + $0x70] sm:$0xff]
    %v324 = vld [vmem:[#allocation8 + $0x78] sm:$0xff]
    %v325 = vld [vmem:[#allocation8 + $0x80] sm:$0xff]
    %v326 = vld [vmem:[#allocation8 + $0x88] sm:$0xff]
    %v327 = vld [vmem:[#allocation8 + $0x90] sm:$0xff]
    %v328 = vld [vmem:[#allocation8 + $0x98] sm:$0xff]
    %v329 = vld [vmem:[#allocation8 + $0xa0] sm:$0xff]
    %v330 = vld [vmem:[#allocation8 + $0xa8] sm:$0xff]
    %v331 = vld [vmem:[#allocation8 + $0xb0] sm:$0xff]
    %v332 = vld [vmem:[#allocation8 + $0xb8] sm:$0xff]
    %v333 = vld [vmem:[#allocation8 + $0xc0] sm:$0xff]
    %v334 = vld [vmem:[#allocation8 + $0xc8] sm:$0xff]
    %v335 = vld [vmem:[#allocation8 + $0xd0] sm:$0xff]
    %v336 = vld [vmem:[#allocation8 + $0xd8] sm:$0xff]
    %v337 = vld [vmem:[#allocation8 + $0xe0] sm:$0xff]
    %v338 = vld [vmem:[#allocation8 + $0xe8] sm:$0xff]
    %v339 = vld [vmem:[#allocation8 + $0xf0] sm:$0xff]
    %v340 = vld [vmem:[#allocation8 + $0xf8] sm:$0xff]
    %v341 = vld [vmem:[#allocation8 + $0x100] sm:$0xff]
    %v342 = vld [vmem:[#allocation8 + $0x108] sm:$0xff]
    %v343 = vld [vmem:[#allocation8 + $0x110] sm:$0xff]
    %v344 = vld [vmem:[#allocation8 + $0x118] sm:$0xff]
    %v345 = vld [vmem:[#allocation8 + $0x120] sm:$0xff]
    %v346 = vld [vmem:[#allocation8 + $0x128] sm:$0xff]
    %v347 = vld [vmem:[#allocation8 + $0x130] sm:$0xff]
    %v348 = vld [vmem:[#allocation8 + $0x138] sm:$0xff]
    %v349 = vld [vmem:[#allocation8 + $0x140] sm:$0xff]
    %v350 = vld [vmem:[#allocation8 + $0x148] sm:$0xff]
    %v351 = vld [vmem:[#allocation8 + $0x150] sm:$0xff]
    %v352 = vld [vmem:[#allocation8 + $0x158] sm:$0xff]
    %v353 = vld [vmem:[#allocation8 + $0x160] sm:$0xff]
    %v354 = vld [vmem:[#allocation8 + $0x168] sm:$0xff]
    %v355 = vld [vmem:[#allocation8 + $0x170] sm:$0xff]
    %v356 = vld [vmem:[#allocation8 + $0x178] sm:$0xff]
    %v357 = vld [vmem:[#allocation8 + $0x180] sm:$0xff]
    %v358 = vld [vmem:[#allocation8 + $0x188] sm:$0xff]
    %v359 = vld [vmem:[#allocation8 + $0x190] sm:$0xff]
    %v360 = vld [vmem:[#allocation8 + $0x198] sm:$0xff]
    %v361 = vld [vmem:[#allocation8 + $0x1a0] sm:$0xff]
    %v362 = vld [vmem:[#allocation8 + $0x1a8] sm:$0xff]
    %v363 = vld [vmem:[#allocation8 + $0x1b0] sm:$0xff]
    %v364 = vld [vmem:[#allocation8 + $0x1b8] sm:$0xff]
    %v365 = vld [vmem:[#allocation8 + $0x1c0] sm:$0xff]
    %v366 = vld [vmem:[#allocation8 + $0x1c8] sm:$0xff]
    %v367 = vld [vmem:[#allocation8 + $0x1d0] sm:$0xff]
    %v368 = vld [vmem:[#allocation8 + $0x1d8] sm:$0xff]
    %v369 = vld [vmem:[#allocation8 + $0x1e0] sm:$0xff]
    %v370 = vld [vmem:[#allocation8 + $0x1e8] sm:$0xff]
    %v371 = vld [vmem:[#allocation8 + $0x1f0] sm:$0xff]
    %v372 = vld [vmem:[#allocation8 + $0x1f8] sm:$0xff]
    %v373 = vld [vmem:[%s4] sm:$0x1]
    %v375 = vlaneseq
    %v376 = vshrl.u32 %v375, 7
    %v377 = vsub.s32 0, %v376
    %v378 = vrot.slane %v373, %v377
    %380 = vmatprep.subr.mxu0 0.0
    %381 = vmatpush1.msra.mxu0 %v324
    %382 = vmatprep.subr.mxu0 0.0
    %383 = vmatpush1.msra.mxu0 %v323
    %384 = vmatprep.subr.mxu0 0.0
    %385 = vmatpush1.msra.mxu0 %v322
    %386 = vmatprep.subr.mxu0 0.0
    %387 = vmatpush1.msra.mxu0 %v321
    %388 = vmatprep.subr.mxu0 0.0
    %389 = vmatpush1.msra.mxu0 %v320
    %390 = vmatprep.subr.mxu0 0.0
    %391 = vmatpush1.msra.mxu0 %v319
    %392 = vmatprep.subr.mxu0 0.0
    %393 = vmatpush1.msra.mxu0 %v318
    %394 = vmatprep.subr.mxu0 0.0
    %395 = vmatpush1.msra.mxu0 %v317
    %396 = vmatprep.subr.mxu0 0.0
    %397 = vmatpush1.msra.mxu0 %v316
    %398 = vmatprep.subr.mxu0 0.0
    %399 = vmatpush1.msra.mxu0 %v315
    %400 = vmatprep.subr.mxu0 0.0
    %401 = vmatpush1.msra.mxu0 %v314
    %402 = vmatprep.subr.mxu0 0.0
    %403 = vmatpush1.msra.mxu0 %v313
    %404 = vmatprep.subr.mxu0 0.0
    %405 = vmatpush1.msra.mxu0 %v312
    %406 = vmatprep.subr.mxu0 0.0
    %407 = vmatpush1.msra.mxu0 %v311
    %408 = vmatprep.subr.mxu0 0.0
    %409 = vmatpush1.msra.mxu0 %v310
    %410 = vmatprep.subr.mxu0 0.0
    %411 = vmatpush1.msra.mxu0 %v309
    %412 = vmatprep.subr.mxu0 0.0
    %413 = vmatpush2.msra.mxu0 %v340
    %414 = vmatprep.subr.mxu0 0.0
    %415 = vmatpush2.msra.mxu0 %v339
    %416 = vmatprep.subr.mxu0 0.0
    %417 = vmatpush2.msra.mxu0 %v338
    %418 = vmatprep.subr.mxu0 0.0
    %419 = vmatpush2.msra.mxu0 %v337
    %420 = vmatprep.subr.mxu0 0.0
    %421 = vmatpush2.msra.mxu0 %v336
    %422 = vmatprep.subr.mxu0 0.0
    %423 = vmatpush2.msra.mxu0 %v335
    %424 = vmatprep.subr.mxu0 0.0
    %425 = vmatpush2.msra.mxu0 %v334
    %426 = vmatprep.subr.mxu0 0.0
    %427 = vmatpush2.msra.mxu0 %v333
    %428 = vmatprep.subr.mxu0 0.0
    %429 = vmatpush2.msra.mxu0 %v332
    %430 = vmatprep.subr.mxu0 0.0
    %431 = vmatpush2.msra.mxu0 %v331
    %432 = vmatprep.subr.mxu0 0.0
    %433 = vmatpush2.msra.mxu0 %v330
    %434 = vmatprep.subr.mxu0 0.0
    %435 = vmatpush2.msra.mxu0 %v329
    %436 = vmatprep.subr.mxu0 0.0
    %437 = vmatpush2.msra.mxu0 %v328
    %438 = vmatprep.subr.mxu0 0.0
    %439 = vmatpush2.msra.mxu0 %v327
    %440 = vmatprep.subr.mxu0 0.0
    %441 = vmatpush2.msra.mxu0 %v326
    %442 = vmatprep.subr.mxu0 0.0
    %443 = vmatpush2.msra.mxu0 %v325
    %444 = vmatprep.mubr.f32.mxu0 %v306
    %445 = vmatmul.mubr.f32.gmra.mxu0 %v305
    %v446 = vpop.f32.mrf.mxu0
    %v447 = vadd.f32 %v378, %v446
    %v448 = vpop.f32.mrf.mxu0
    %449 = vdwg.mxu0
    %450 = vmatprep.subr.mxu0 0.0
    %451 = vmatpush1.msra.mxu0 %v356
    %452 = vmatprep.subr.mxu0 0.0
    %453 = vmatpush1.msra.mxu0 %v355
    %454 = vmatprep.subr.mxu0 0.0
    %455 = vmatpush1.msra.mxu0 %v354
    %456 = vmatprep.subr.mxu0 0.0
    %457 = vmatpush1.msra.mxu0 %v353
    %458 = vmatprep.subr.mxu0 0.0
    %459 = vmatpush1.msra.mxu0 %v352
    %460 = vmatprep.subr.mxu0 0.0
    %461 = vmatpush1.msra.mxu0 %v351
    %462 = vmatprep.subr.mxu0 0.0
    %463 = vmatpush1.msra.mxu0 %v350
    %464 = vmatprep.subr.mxu0 0.0
    %465 = vmatpush1.msra.mxu0 %v349
    %466 = vmatprep.subr.mxu0 0.0
    %467 = vmatpush1.msra.mxu0 %v348
    %468 = vmatprep.subr.mxu0 0.0
    %469 = vmatpush1.msra.mxu0 %v347
    %470 = vmatprep.subr.mxu0 0.0
    %471 = vmatpush1.msra.mxu0 %v346
    %472 = vmatprep.subr.mxu0 0.0
    %473 = vmatpush1.msra.mxu0 %v345
    %474 = vmatprep.subr.mxu0 0.0
    %475 = vmatpush1.msra.mxu0 %v344
    %476 = vmatprep.subr.mxu0 0.0
    %477 = vmatpush1.msra.mxu0 %v343
    %478 = vmatprep.subr.mxu0 0.0
    %479 = vmatpush1.msra.mxu0 %v342
    %480 = vmatprep.subr.mxu0 0.0
    %481 = vmatpush1.msra.mxu0 %v341
    %482 = vmatprep.subr.mxu0 0.0
    %483 = vmatpush2.msra.mxu0 %v372
    %484 = vmatprep.subr.mxu0 0.0
    %485 = vmatpush2.msra.mxu0 %v371
    %486 = vmatprep.subr.mxu0 0.0
    %487 = vmatpush2.msra.mxu0 %v370
    %488 = vmatprep.subr.mxu0 0.0
    %489 = vmatpush2.msra.mxu0 %v369
    %490 = vmatprep.subr.mxu0 0.0
    %491 = vmatpush2.msra.mxu0 %v368
    %492 = vmatprep.subr.mxu0 0.0
    %493 = vmatpush2.msra.mxu0 %v367
    %494 = vmatprep.subr.mxu0 0.0
    %495 = vmatpush2.msra.mxu0 %v366
    %496 = vmatprep.subr.mxu0 0.0
    %497 = vmatpush2.msra.mxu0 %v365
    %498 = vmatprep.subr.mxu0 0.0
    %499 = vmatpush2.msra.mxu0 %v364
    %500 = vmatprep.subr.mxu0 0.0
    %501 = vmatpush2.msra.mxu0 %v363
    %502 = vmatprep.subr.mxu0 0.0
    %503 = vmatpush2.msra.mxu0 %v362
    %504 = vmatprep.subr.mxu0 0.0
    %505 = vmatpush2.msra.mxu0 %v361
    %506 = vmatprep.subr.mxu0 0.0
    %507 = vmatpush2.msra.mxu0 %v360
    %508 = vmatprep.subr.mxu0 0.0
    %509 = vmatpush2.msra.mxu0 %v359
    %510 = vmatprep.subr.mxu0 0.0
    %511 = vmatpush2.msra.mxu0 %v358
    %512 = vmatprep.subr.mxu0 0.0
    %513 = vmatpush2.msra.mxu0 %v357
    %514 = vmatprep.mubr.f32.mxu0 %v308
    %515 = vmatmul.mubr.f32.gmra.mxu0 %v307
    %v516 = vpop.f32.mrf.mxu0
    %v517 = vadd.f32 %v447, %v516
    %v518 = vpop.f32.mrf.mxu0
    %519 = vdwg.mxu0
    %v520 = vmax.f32 %v517, 0.0
    %v521 = vld [vmem:[#allocation10] sm:$0xff]
    %v522 = vld [vmem:[#allocation10 + $0x8] sm:$0xff]
    %v523 = vld [vmem:[#allocation10 + $0x10] sm:$0xff]
    %v524 = vld [vmem:[#allocation10 + $0x18] sm:$0xff]
    %v525 = vld [vmem:[#allocation10 + $0x20] sm:$0xff]
    %v526 = vld [vmem:[#allocation10 + $0x28] sm:$0xff]
    %v527 = vld [vmem:[#allocation10 + $0x30] sm:$0xff]
    %v528 = vld [vmem:[#allocation10 + $0x38] sm:$0xff]
    %v529 = vld [vmem:[#allocation10 + $0x40] sm:$0xff]
    %v530 = vld [vmem:[#allocation10 + $0x48] sm:$0xff]
    %v531 = vld [vmem:[#allocation10 + $0x50] sm:$0xff]
    %v532 = vld [vmem:[#allocation10 + $0x58] sm:$0xff]
    %v533 = vld [vmem:[#allocation10 + $0x60] sm:$0xff]
    %v534 = vld [vmem:[#allocation10 + $0x68] sm:$0xff]
    %v535 = vld [vmem:[#allocation10 + $0x70] sm:$0xff]
    %v536 = vld [vmem:[#allocation10 + $0x78] sm:$0xff]
    %v537 = vld [vmem:[%s6] sm:$0x1]
    %v539 = vlaneseq
    %v540 = vshrl.u32 %v539, 7
    %v541 = vsub.s32 0, %v540
    %v542 = vrot.slane %v537, %v541
    %544 = vmatprep.subr.mxu0 0.0
    %545 = vmatpush1.msra.mxu0 %v536
    %546 = vmatprep.subr.mxu0 0.0
    %547 = vmatpush1.msra.mxu0 %v535
    %548 = vmatprep.subr.mxu0 0.0
    %549 = vmatpush1.msra.mxu0 %v534
    %550 = vmatprep.subr.mxu0 0.0
    %551 = vmatpush1.msra.mxu0 %v533
    %552 = vmatprep.subr.mxu0 0.0
    %553 = vmatpush1.msra.mxu0 %v532
    %554 = vmatprep.subr.mxu0 0.0
    %555 = vmatpush1.msra.mxu0 %v531
    %556 = vmatprep.subr.mxu0 0.0
    %557 = vmatpush1.msra.mxu0 %v530
    %558 = vmatprep.subr.mxu0 0.0
    %559 = vmatpush1.msra.mxu0 %v529
    %560 = vmatprep.subr.mxu0 0.0
    %561 = vmatpush1.msra.mxu0 %v528
    %562 = vmatprep.subr.mxu0 0.0
    %563 = vmatpush1.msra.mxu0 %v527
    %564 = vmatprep.subr.mxu0 0.0
    %565 = vmatpush1.msra.mxu0 %v526
    %566 = vmatprep.subr.mxu0 0.0
    %567 = vmatpush1.msra.mxu0 %v525
    %568 = vmatprep.subr.mxu0 0.0
    %569 = vmatpush1.msra.mxu0 %v524
    %570 = vmatprep.subr.mxu0 0.0
    %571 = vmatpush1.msra.mxu0 %v523
    %572 = vmatprep.subr.mxu0 0.0
    %573 = vmatpush1.msra.mxu0 %v522
    %574 = vmatprep.subr.mxu0 0.0
    %575 = vmatpush1.msra.mxu0 %v521
    %576 = vmatprep.subr.mxu0 0.0
    %577 = vmatpush2.msra.mxu0 0.0
    %578 = vmatprep.subr.mxu0 0.0
    %579 = vmatpush2.msra.mxu0 0.0
    %580 = vmatprep.subr.mxu0 0.0
    %581 = vmatpush2.msra.mxu0 0.0
    %582 = vmatprep.subr.mxu0 0.0
    %583 = vmatpush2.msra.mxu0 0.0
    %584 = vmatprep.subr.mxu0 0.0
    %585 = vmatpush2.msra.mxu0 0.0
    %586 = vmatprep.subr.mxu0 0.0
    %587 = vmatpush2.msra.mxu0 0.0
    %588 = vmatprep.subr.mxu0 0.0
    %589 = vmatpush2.msra.mxu0 0.0
    %590 = vmatprep.subr.mxu0 0.0
    %591 = vmatpush2.msra.mxu0 0.0
    %592 = vmatprep.subr.mxu0 0.0
    %593 = vmatpush2.msra.mxu0 0.0
    %594 = vmatprep.subr.mxu0 0.0
    %595 = vmatpush2.msra.mxu0 0.0
    %596 = vmatprep.subr.mxu0 0.0
    %597 = vmatpush2.msra.mxu0 0.0
    %598 = vmatprep.subr.mxu0 0.0
    %599 = vmatpush2.msra.mxu0 0.0
    %600 = vmatprep.subr.mxu0 0.0
    %601 = vmatpush2.msra.mxu0 0.0
    %602 = vmatprep.subr.mxu0 0.0
    %603 = vmatpush2.msra.mxu0 0.0
    %604 = vmatprep.subr.mxu0 0.0
    %605 = vmatpush2.msra.mxu0 0.0
    %606 = vmatprep.subr.mxu0 0.0
    %607 = vmatpush2.msra.mxu0 0.0
    %608 = vmatprep.mubr.f32.mxu0 0.0
    %609 = vmatmul.mubr.f32.gmra.mxu0 %v520
    %v610 = vpop.f32.mrf.mxu0
    %v611 = vadd.f32 %v542, %v610
    %v612 = vpop.f32.mrf.mxu0
    %613 = vdwg.mxu0
    %614 = vst [vmem:[#allocation11] sm:$0xff] %v611
    // Predicated region
    $region50: #{tpu_custom_call.1} parent=1 // pred_check
      _
    $region51: #{tpu_custom_call.1} parent=1 // pred_check_branch
      %616 = sbr.rel (0) target = $region53
    $region52: #{tpu_custom_call.1} parent=1 // pred_region
      %s618 = ssub.s32 128, 128
      %619 = vsyncadd [#allocation4], %s618
      %s621 = sshll.u32 [#allocation11], 4
      %s622 = int_to_ptr.vmem [resolvable:$true] %s621
      %624 = dma.vmem_to_hbm [thread:$0]  %s622, 128, %s7, [#allocation4]
    $region53: #{tpu_custom_call.1} parent=1 // pred_fallthru
      _
    // Predicated region
    $region54: #{tpu_custom_call.1} parent=1 // pred_check
      _
    $region55: #{tpu_custom_call.1} parent=1 // pred_check_branch
      %626 = sbr.rel (0) target = $region57
    $region56: #{tpu_custom_call.1} parent=1 // pred_region
      %627 = dma.done [#allocation4], 128
    $region57: #{tpu_custom_call.1} parent=1 // pred_fallthru
      _
    %628 = vsyncpa [#allocation3], 1
    %629 = vsyncpa [#allocation6], 1
    %630 = vsyncpa [#allocation9], 1
    %631 = vsyncpa [#allocation4], 1

</llo_original>
